<compile_context>
chip_gen: v7x
topology: tpu7x:2x2x1
jax: 0.10.0
libtpu: 0.0.40
codegen_flags: <defaults>
</compile_context>

<pallas_src>
import functools

import jax
import jax.numpy as jnp
from jax.experimental import pallas as pl
from jax.experimental.pallas import tpu as pltpu

LN_EPS = 1e-5  # PyTorch LayerNorm default


def _round_up(x, m):
    return ((x + m - 1) // m) * m


def _masked_layernorm(x, gamma, beta, true_dim, eps=LN_EPS):
    """LayerNorm over the last axis, ignoring zero-padded lanes >= true_dim."""
    padded = x.shape[-1] != true_dim
    if padded:
        col = jax.lax.broadcasted_iota(jnp.int32, x.shape, x.ndim - 1)
        mask = (col < true_dim).astype(x.dtype)
        x = x * mask
    inv_n = jnp.float32(1.0 / float(true_dim))
    mu = jnp.sum(x, axis=-1, keepdims=True) * inv_n
    xc = x - mu
    if padded:
        xc = xc * mask
    var = jnp.sum(xc * xc, axis=-1, keepdims=True) * inv_n
    return xc * jax.lax.rsqrt(var + eps) * gamma + beta


def _text_net_kernel(x_ref, g1_ref, b1_ref, w1_ref, bias1_ref,
                     w2_ref, bias2_ref, g2_ref, b2_ref, o_ref,
                     *, d_true, h_true):
    x = x_ref[...].astype(jnp.float32)

    # --- LayerNorm(word_dim) (f32, padded-lane aware) ---
    xn = _masked_layernorm(x, g1_ref[...], b1_ref[...], d_true)

    # --- Linear(word_dim, word_dim): low-precision MXU inputs, f32 accum ---
    h = jnp.dot(xn.astype(w1_ref.dtype), w1_ref[...],
                preferred_element_type=jnp.float32) + bias1_ref[...]

    # --- GELU (exact erf form, PyTorch nn.GELU default) ---
    h = 0.5 * h * (1.0 + jax.lax.erf(h * jnp.float32(0.7071067811865476)))

    # --- Dropout(0.1): identity in eval mode ---
    # TODO(synk): training-mode dropout (stateful PRNG mask) not implemented.

    # --- Linear(word_dim, hidden_dim) ---
    y = jnp.dot(h.astype(w2_ref.dtype), w2_ref[...],
                preferred_element_type=jnp.float32) + bias2_ref[...]

    # --- LayerNorm(hidden_dim) ---
    o = _masked_layernorm(y, g2_ref[...], b2_ref[...], h_true)
    o_ref[...] = o.astype(o_ref.dtype)


def _const_spec(shape):
    """BlockSpec for grid-invariant operands; single-buffered if supported."""
    idx = lambda i: (0, 0)
    if hasattr(pl, "Buffered"):
        return pl.BlockSpec(shape, idx, pipeline_mode=pl.Buffered(1))
    return pl.BlockSpec(shape, idx)


@functools.partial(jax.jit, static_argnames=("tile_m", "use_bf16_matmul"))
def text_network_forward(word_input, params, *, tile_m=256,
                         use_bf16_matmul=True):
    """word_input: (B, S, word_dim). Returns (B, S, hidden_dim)."""
    B, S, D = word_input.shape
    H = params["w2"].shape[1]
    M = B * S

    # Lane-dense feature dims (multiples of 128); masked LN keeps exact math.
    Dp = _round_up(D, 128)
    Hp = _round_up(H, 128)

    # Large row tiles for MXU occupancy, multiple of 8 (sublane), but keep the
    # grid >= 2 steps so both v7x TensorCores can be fed.
    tile_m = max(8, min(int(tile_m), _round_up(pl.cdiv(M, 2), 8)))
    Mp = _round_up(M, tile_m)
    grid = (Mp // tile_m,)

    w_dtype = jnp.bfloat16 if use_bf16_matmul else jnp.float32

    def pad2(a, r, c):
        return jnp.pad(a, ((0, r - a.shape[0]), (0, c - a.shape[1])))

    x2d = pad2(word_input.reshape(M, D), Mp, Dp)
    g1 = pad2(params["ln1_g"].reshape(1, D), 1, Dp).astype(jnp.float32)
    b1 = pad2(params["ln1_b"].reshape(1, D), 1, Dp).astype(jnp.float32)
    w1 = pad2(params["w1"], Dp, Dp).astype(w_dtype)
    bias1 = pad2(params["b1"].reshape(1, D), 1, Dp).astype(jnp.float32)
    w2 = pad2(params["w2"], Dp, Hp).astype(w_dtype)
    bias2 = pad2(params["b2"].reshape(1, H), 1, Hp).astype(jnp.float32)
    g2 = pad2(params["ln2_g"].reshape(1, H), 1, Hp).astype(jnp.float32)
    b2 = pad2(params["ln2_b"].reshape(1, H), 1, Hp).astype(jnp.float32)

    # VMEM budget: x/out tiles double-buffered, weights/vectors single-buffered.
    act_bytes = jnp.dtype(word_input.dtype).itemsize
    w_bytes = jnp.dtype(w_dtype).itemsize
    vmem_est = (2 * tile_m * Dp * act_bytes
                + 2 * tile_m * Hp * act_bytes
                + (Dp * Dp + Dp * Hp) * w_bytes
                + (3 * Dp + 3 * Hp) * 4)
    vmem_limit = int(min(max(2 * vmem_est + (8 << 20), 32 << 20), 64 << 20))

    row_tile = lambda i: (i, 0)
    kernel = functools.partial(_text_net_kernel, d_true=D, h_true=H)

    out = pl.pallas_call(
        kernel,
        out_shape=jax.ShapeDtypeStruct((Mp, Hp), word_input.dtype),
        grid_spec=pltpu.PrefetchScalarGridSpec(
            num_scalar_prefetch=0,
            grid=grid,
            in_specs=[
                pl.BlockSpec((tile_m, Dp), row_tile),   # x rows
                _const_spec((1, Dp)),                   # gamma1
                _const_spec((1, Dp)),                   # beta1
                _const_spec((Dp, Dp)),                  # W1 (in, out)
                _const_spec((1, Dp)),                   # bias1
                _const_spec((Dp, Hp)),                  # W2 (in, out)
                _const_spec((1, Hp)),                   # bias2
                _const_spec((1, Hp)),                   # gamma2
                _const_spec((1, Hp)),                   # beta2
            ],
            out_specs=pl.BlockSpec((tile_m, Hp), row_tile),
        ),
        compiler_params=pltpu.CompilerParams(
            dimension_semantics=("parallel",),
            vmem_limit_bytes=vmem_limit,
        ),
    )(x2d, g1, b1, w1, bias1, w2, bias2, g2, b2)

    return out[:M, :H].reshape(B, S, H)


def init_params(key, word_dim, hidden_dim, dtype=jnp.float32):
    k1, k2, k3, k4 = jax.random.split(key, 4)
    scale1 = 1.0 / jnp.sqrt(word_dim)
    params = {
        "ln1_g": jnp.ones((1, word_dim), dtype),
        "ln1_b": jnp.zeros((1, word_dim), dtype),
        # Weights stored as (in_features, out_features) for x @ W.
        "w1": (jax.random.uniform(k1, (word_dim, word_dim), dtype,
                                  minval=-1.0, maxval=1.0) * scale1),
        "b1": (jax.random.uniform(k2, (1, word_dim), dtype,
                                  minval=-1.0, maxval=1.0) * scale1),
        "w2": (jax.random.uniform(k3, (word_dim, hidden_dim), dtype,
                                  minval=-1.0, maxval=1.0) * scale1),
        "b2": (jax.random.uniform(k4, (1, hidden_dim), dtype,
                                  minval=-1.0, maxval=1.0) * scale1),
        "ln2_g": jnp.ones((1, hidden_dim), dtype),
        "ln2_b": jnp.zeros((1, hidden_dim), dtype),
    }
    return params


def _reference_forward(word_input, params):
    """Pure-JAX reference (eval-mode dropout), all f32."""
    x = word_input.astype(jnp.float32)
    mu = x.mean(-1, keepdims=True)
    var = ((x - mu) ** 2).mean(-1, keepdims=True)
    x = (x - mu) / jnp.sqrt(var + LN_EPS) * params["ln1_g"][0] + params["ln1_b"][0]
    h = x @ params["w1"] + params["b1"][0]
    h = 0.5 * h * (1.0 + jax.lax.erf(h / jnp.sqrt(2.0)))
    y = h @ params["w2"] + params["b2"][0]
    mu2 = y.mean(-1, keepdims=True)
    var2 = ((y - mu2) ** 2).mean(-1, keepdims=True)
    y = (y - mu2) / jnp.sqrt(var2 + LN_EPS) * params["ln2_g"][0] + params["ln2_b"][0]
    return y.astype(word_input.dtype)


if __name__ == "__main__":
    B, S = 2, 8          # batch, sequence length
    word_dim = 32
    hidden_dim = 32

    key = jax.random.PRNGKey(0)
    k_in, k_params = jax.random.split(key)
    word_input = jax.random.normal(k_in, (B, S, word_dim), jnp.float32)
    params = init_params(k_params, word_dim, hidden_dim)

    ref = _reference_forward(word_input, params)

    # Strict f32 path: exact-semantics check vs the pure-JAX reference.
    out_f32 = jax.block_until_ready(
        text_network_forward(word_input, params, use_bf16_matmul=False))
    assert out_f32.shape == (B, S, hidden_dim)
    assert jnp.allclose(out_f32, ref, atol=1e-4, rtol=1e-4), "f32 mismatch"

    # Default fast path: bf16 MXU inputs with f32 accumulation.
    out = jax.block_until_ready(text_network_forward(word_input, params))
    assert out.shape == (B, S, hidden_dim)
    assert jnp.allclose(out, ref, atol=5e-2, rtol=5e-2), "bf16 mismatch"

    print("KERNEL_OK")
</pallas_src>

<mosaic_0001>
module attributes {stable_mosaic.version = 11 : i64} {
  func.func @_text_net_kernel(%arg0: i32, %arg1: memref<8x128xf32, #tpu.memory_space<vmem>>, %arg2: memref<1x128xf32, #tpu.memory_space<vmem>>, %arg3: memref<1x128xf32, #tpu.memory_space<vmem>>, %arg4: memref<128x128xf32, #tpu.memory_space<vmem>>, %arg5: memref<1x128xf32, #tpu.memory_space<vmem>>, %arg6: memref<128x128xf32, #tpu.memory_space<vmem>>, %arg7: memref<1x128xf32, #tpu.memory_space<vmem>>, %arg8: memref<1x128xf32, #tpu.memory_space<vmem>>, %arg9: memref<1x128xf32, #tpu.memory_space<vmem>>, %arg10: memref<8x128xf32, #tpu.memory_space<vmem>>) attributes {dimension_semantics = [#tpu.dimension_semantics<parallel>], iteration_bounds = array<i64: 2>, scalar_prefetch = 0 : i64, scratch_operands = 0 : i64, tpu.core_type = #tpu.core_type<tc>, window_params = [{transform_indices = @transform_0, window_bounds = array<i64: 8, 128>}, {pipeline_mode = #tpu.pipeline_mode<synchronous>, transform_indices = @transform_1, window_bounds = array<i64: 1, 128>}, {pipeline_mode = #tpu.pipeline_mode<synchronous>, transform_indices = @transform_2, window_bounds = array<i64: 1, 128>}, {pipeline_mode = #tpu.pipeline_mode<synchronous>, transform_indices = @transform_3, window_bounds = array<i64: 128, 128>}, {pipeline_mode = #tpu.pipeline_mode<synchronous>, transform_indices = @transform_4, window_bounds = array<i64: 1, 128>}, {pipeline_mode = #tpu.pipeline_mode<synchronous>, transform_indices = @transform_5, window_bounds = array<i64: 128, 128>}, {pipeline_mode = #tpu.pipeline_mode<synchronous>, transform_indices = @transform_6, window_bounds = array<i64: 1, 128>}, {pipeline_mode = #tpu.pipeline_mode<synchronous>, transform_indices = @transform_7, window_bounds = array<i64: 1, 128>}, {pipeline_mode = #tpu.pipeline_mode<synchronous>, transform_indices = @transform_8, window_bounds = array<i64: 1, 128>}, {transform_indices = @transform_9, window_bounds = array<i64: 8, 128>}]} {
    %c0 = arith.constant 0 : index
    %c0_0 = arith.constant 0 : index
    %0 = vector.load %arg1[%c0, %c0_0] : memref<8x128xf32, #tpu.memory_space<vmem>>, vector<8x128xf32>
    %c0_1 = arith.constant 0 : index
    %c0_2 = arith.constant 0 : index
    %1 = vector.load %arg2[%c0_1, %c0_2] : memref<1x128xf32, #tpu.memory_space<vmem>>, vector<1x128xf32>
    %c0_3 = arith.constant 0 : index
    %c0_4 = arith.constant 0 : index
    %2 = vector.load %arg3[%c0_3, %c0_4] : memref<1x128xf32, #tpu.memory_space<vmem>>, vector<1x128xf32>
    %3 = tpu.iota {dimensions = array<i32: 1>} : vector<8x128xi32>
    %c32_i32 = arith.constant 32 : i32
    %4 = vector.broadcast %c32_i32 : i32 to vector<8x128xi32>
    %5 = arith.cmpi slt, %3, %4 : vector<8x128xi32>
    %6 = arith.extui %5 : vector<8x128xi1> to vector<8x128xi32>
    %7 = arith.sitofp %6 : vector<8x128xi32> to vector<8x128xf32>
    %8 = arith.mulf %0, %7 : vector<8x128xf32>
    %cst = arith.constant dense<0.000000e+00> : vector<8xf32>
    %9 = vector.multi_reduction <add>, %8, %cst [1] : vector<8x128xf32> to vector<8xf32>
    %10 = vector.shape_cast %9 : vector<8xf32> to vector<8x1xf32>
    %cst_5 = arith.constant 3.125000e-02 : f32
    %11 = vector.broadcast %cst_5 : f32 to vector<8x1xf32>
    %12 = arith.mulf %10, %11 : vector<8x1xf32>
    %13 = vector.broadcast %12 : vector<8x1xf32> to vector<8x128xf32>
    %14 = arith.subf %8, %13 : vector<8x128xf32>
    %15 = arith.mulf %14, %7 : vector<8x128xf32>
    %16 = arith.mulf %15, %15 : vector<8x128xf32>
    %cst_6 = arith.constant dense<0.000000e+00> : vector<8xf32>
    %17 = vector.multi_reduction <add>, %16, %cst_6 [1] : vector<8x128xf32> to vector<8xf32>
    %18 = vector.shape_cast %17 : vector<8xf32> to vector<8x1xf32>
    %cst_7 = arith.constant 3.125000e-02 : f32
    %19 = vector.broadcast %cst_7 : f32 to vector<8x1xf32>
    %20 = arith.mulf %18, %19 : vector<8x1xf32>
    %cst_8 = arith.constant 9.99999974E-6 : f32
    %21 = vector.broadcast %cst_8 : f32 to vector<8x1xf32>
    %22 = arith.addf %20, %21 : vector<8x1xf32>
    %23 = math.rsqrt %22 : vector<8x1xf32>
    %24 = vector.broadcast %23 : vector<8x1xf32> to vector<8x128xf32>
    %25 = arith.mulf %15, %24 : vector<8x128xf32>
    %26 = vector.broadcast %1 : vector<1x128xf32> to vector<8x128xf32>
    %27 = arith.mulf %25, %26 : vector<8x128xf32>
    %28 = vector.broadcast %2 : vector<1x128xf32> to vector<8x128xf32>
    %29 = arith.addf %27, %28 : vector<8x128xf32>
    %c0_9 = arith.constant 0 : index
    %c0_10 = arith.constant 0 : index
    %30 = vector.load %arg4[%c0_9, %c0_10] : memref<128x128xf32, #tpu.memory_space<vmem>>, vector<128x128xf32>
    %cst_11 = arith.constant dense<0.000000e+00> : vector<8x128xf32>
    %31 = tpu.matmul %29, %30, %cst_11 {dimension_numbers = #tpu.dot_dimension_numbers<[1], [0], [0], [1], [0, 0, 1, 1], [], []>} : vector<8x128xf32>, vector<128x128xf32>, vector<8x128xf32> -> vector<8x128xf32>
    %c0_12 = arith.constant 0 : index
    %c0_13 = arith.constant 0 : index
    %32 = vector.load %arg5[%c0_12, %c0_13] : memref<1x128xf32, #tpu.memory_space<vmem>>, vector<1x128xf32>
    %33 = vector.broadcast %32 : vector<1x128xf32> to vector<8x128xf32>
    %34 = arith.addf %31, %33 : vector<8x128xf32>
    %cst_14 = arith.constant 5.000000e-01 : f32
    %35 = vector.broadcast %cst_14 : f32 to vector<8x128xf32>
    %36 = arith.mulf %35, %34 : vector<8x128xf32>
    %cst_15 = arith.constant 0.707106769 : f32
    %37 = vector.broadcast %cst_15 : f32 to vector<8x128xf32>
    %38 = arith.mulf %34, %37 : vector<8x128xf32>
    %39 = math.erf %38 : vector<8x128xf32>
    %cst_16 = arith.constant 1.000000e+00 : f32
    %40 = vector.broadcast %cst_16 : f32 to vector<8x128xf32>
    %41 = arith.addf %40, %39 : vector<8x128xf32>
    %42 = arith.mulf %36, %41 : vector<8x128xf32>
    %c0_17 = arith.constant 0 : index
    %c0_18 = arith.constant 0 : index
    %43 = vector.load %arg6[%c0_17, %c0_18] : memref<128x128xf32, #tpu.memory_space<vmem>>, vector<128x128xf32>
    %cst_19 = arith.constant dense<0.000000e+00> : vector<8x128xf32>
    %44 = tpu.matmul %42, %43, %cst_19 {dimension_numbers = #tpu.dot_dimension_numbers<[1], [0], [0], [1], [0, 0, 1, 1], [], []>} : vector<8x128xf32>, vector<128x128xf32>, vector<8x128xf32> -> vector<8x128xf32>
    %c0_20 = arith.constant 0 : index
    %c0_21 = arith.constant 0 : index
    %45 = vector.load %arg7[%c0_20, %c0_21] : memref<1x128xf32, #tpu.memory_space<vmem>>, vector<1x128xf32>
    %46 = vector.broadcast %45 : vector<1x128xf32> to vector<8x128xf32>
    %47 = arith.addf %44, %46 : vector<8x128xf32>
    %c0_22 = arith.constant 0 : index
    %c0_23 = arith.constant 0 : index
    %48 = vector.load %arg8[%c0_22, %c0_23] : memref<1x128xf32, #tpu.memory_space<vmem>>, vector<1x128xf32>
    %c0_24 = arith.constant 0 : index
    %c0_25 = arith.constant 0 : index
    %49 = vector.load %arg9[%c0_24, %c0_25] : memref<1x128xf32, #tpu.memory_space<vmem>>, vector<1x128xf32>
    %50 = tpu.iota {dimensions = array<i32: 1>} : vector<8x128xi32>
    %c32_i32_26 = arith.constant 32 : i32
    %51 = vector.broadcast %c32_i32_26 : i32 to vector<8x128xi32>
    %52 = arith.cmpi slt, %50, %51 : vector<8x128xi32>
    %53 = arith.extui %52 : vector<8x128xi1> to vector<8x128xi32>
    %54 = arith.sitofp %53 : vector<8x128xi32> to vector<8x128xf32>
    %55 = arith.mulf %47, %54 : vector<8x128xf32>
    %cst_27 = arith.constant dense<0.000000e+00> : vector<8xf32>
    %56 = vector.multi_reduction <add>, %55, %cst_27 [1] : vector<8x128xf32> to vector<8xf32>
    %57 = vector.shape_cast %56 : vector<8xf32> to vector<8x1xf32>
    %cst_28 = arith.constant 3.125000e-02 : f32
    %58 = vector.broadcast %cst_28 : f32 to vector<8x1xf32>
    %59 = arith.mulf %57, %58 : vector<8x1xf32>
    %60 = vector.broadcast %59 : vector<8x1xf32> to vector<8x128xf32>
    %61 = arith.subf %55, %60 : vector<8x128xf32>
    %62 = arith.mulf %61, %54 : vector<8x128xf32>
    %63 = arith.mulf %62, %62 : vector<8x128xf32>
    %cst_29 = arith.constant dense<0.000000e+00> : vector<8xf32>
    %64 = vector.multi_reduction <add>, %63, %cst_29 [1] : vector<8x128xf32> to vector<8xf32>
    %65 = vector.shape_cast %64 : vector<8xf32> to vector<8x1xf32>
    %cst_30 = arith.constant 3.125000e-02 : f32
    %66 = vector.broadcast %cst_30 : f32 to vector<8x1xf32>
    %67 = arith.mulf %65, %66 : vector<8x1xf32>
    %cst_31 = arith.constant 9.99999974E-6 : f32
    %68 = vector.broadcast %cst_31 : f32 to vector<8x1xf32>
    %69 = arith.addf %67, %68 : vector<8x1xf32>
    %70 = math.rsqrt %69 : vector<8x1xf32>
    %71 = vector.broadcast %70 : vector<8x1xf32> to vector<8x128xf32>
    %72 = arith.mulf %62, %71 : vector<8x128xf32>
    %73 = vector.broadcast %48 : vector<1x128xf32> to vector<8x128xf32>
    %74 = arith.mulf %72, %73 : vector<8x128xf32>
    %75 = vector.broadcast %49 : vector<1x128xf32> to vector<8x128xf32>
    %76 = arith.addf %74, %75 : vector<8x128xf32>
    %c0_32 = arith.constant 0 : index
    %c0_33 = arith.constant 0 : index
    %77 = vector.load %arg10[%c0_32, %c0_33] : memref<8x128xf32, #tpu.memory_space<vmem>>, vector<8x128xf32>
    tpu.vector_store %arg10[%c0_32, %c0_33], %76 {strides = array<i32>} : memref<8x128xf32, #tpu.memory_space<vmem>>, vector<8x128xf32>,
    return
  }
  func.func @transform_0(%arg0: i32) -> (i32, i32) {
    %c0_i32 = arith.constant 0 : i32
    %c0_i32_0 = arith.constant 0 : i32
    return %arg0, %c0_i32 : i32, i32
  }
  func.func @transform_1(%arg0: i32) -> (i32, i32) {
    %c0_i32 = arith.constant 0 : i32
    %c0_i32_0 = arith.constant 0 : i32
    %c0_i32_1 = arith.constant 0 : i32
    return %c0_i32, %c0_i32_0 : i32, i32
  }
  func.func @transform_2(%arg0: i32) -> (i32, i32) {
    %c0_i32 = arith.constant 0 : i32
    %c0_i32_0 = arith.constant 0 : i32
    %c0_i32_1 = arith.constant 0 : i32
    return %c0_i32, %c0_i32_0 : i32, i32
  }
  func.func @transform_3(%arg0: i32) -> (i32, i32) {
    %c0_i32 = arith.constant 0 : i32
    %c0_i32_0 = arith.constant 0 : i32
    %c0_i32_1 = arith.constant 0 : i32
    return %c0_i32, %c0_i32_0 : i32, i32
  }
  func.func @transform_4(%arg0: i32) -> (i32, i32) {
    %c0_i32 = arith.constant 0 : i32
    %c0_i32_0 = arith.constant 0 : i32
    %c0_i32_1 = arith.constant 0 : i32
    return %c0_i32, %c0_i32_0 : i32, i32
  }
  func.func @transform_5(%arg0: i32) -> (i32, i32) {
    %c0_i32 = arith.constant 0 : i32
    %c0_i32_0 = arith.constant 0 : i32
    %c0_i32_1 = arith.constant 0 : i32
    return %c0_i32, %c0_i32_0 : i32, i32
  }
  func.func @transform_6(%arg0: i32) -> (i32, i32) {
    %c0_i32 = arith.constant 0 : i32
    %c0_i32_0 = arith.constant 0 : i32
    %c0_i32_1 = arith.constant 0 : i32
    return %c0_i32, %c0_i32_0 : i32, i32
  }
  func.func @transform_7(%arg0: i32) -> (i32, i32) {
    %c0_i32 = arith.constant 0 : i32
    %c0_i32_0 = arith.constant 0 : i32
    %c0_i32_1 = arith.constant 0 : i32
    return %c0_i32, %c0_i32_0 : i32, i32
  }
  func.func @transform_8(%arg0: i32) -> (i32, i32) {
    %c0_i32 = arith.constant 0 : i32
    %c0_i32_0 = arith.constant 0 : i32
    %c0_i32_1 = arith.constant 0 : i32
    return %c0_i32, %c0_i32_0 : i32, i32
  }
  func.func @transform_9(%arg0: i32) -> (i32, i32) {
    %c0_i32 = arith.constant 0 : i32
    %c0_i32_0 = arith.constant 0 : i32
    return %arg0, %c0_i32 : i32, i32
  }
}

</mosaic_0001>

<llo_original>
// kernel: text_network_forward.1
$region0: #{text_network_forward.1}
  #allocation0 [shape = 'u32[]', space=smem, size = 0x4, offset = 0x4, fixed_abs, tag = 'smem constant byte address 0x4 - core index']
  #allocation1 [shape = 'u32[144,128]{1,0:T(1,128)}', space=vmem, size = 0x12000, scoped, tag = 'internal scratch']
  %s0 = inlined_call_operand.vmem [shape: f32[16,128], index: 0, kind: input, shape index: {}]
  %s1 = inlined_call_operand.vmem [shape: f32[1,128], index: 1, kind: input, shape index: {}]
  %s2 = inlined_call_operand.vmem [shape: f32[1,128], index: 2, kind: input, shape index: {}]
  %s3 = inlined_call_operand.vmem [shape: f32[128,128], index: 3, kind: input, shape index: {}]
  %s4 = inlined_call_operand.vmem [shape: f32[1,128], index: 4, kind: input, shape index: {}]
  %s5 = inlined_call_operand.vmem [shape: f32[128,128], index: 5, kind: input, shape index: {}]
  %s6 = inlined_call_operand.vmem [shape: f32[1,128], index: 6, kind: input, shape index: {}]
  %s7 = inlined_call_operand.vmem [shape: f32[1,128], index: 7, kind: input, shape index: {}]
  %s8 = inlined_call_operand.vmem [shape: f32[1,128], index: 8, kind: input, shape index: {}]
  %s9 = inlined_call_operand.vmem [shape: f32[16,128], index: 9, kind: output, shape index: {}]
  %s10 = sld [smem:[#allocation0]]
  $region69: #{text_network_forward.1} parent=0
    _
  %s12 = ssub.s32 1, %s10
  %s13 = scalar_select 0, %s12, %s10
  loop: start=0, step=1, limit=4
  $region2: #{text_network_forward.1} parent=0 // loop_pre_header
    _
  $region3: #{text_network_forward.1} parent=0 // loop_header
    %s15 = sphi 0, %s19
    %p16 = scmp.ge.s32.totalorder %s15, 4
    %s25 = sphi 0, %s27
    %s28 = sphi 0, %s25
    %s29 = sphi 0, %s28
    %s45 = sphi 0, %s29
    %s49 = sphi 0, %s49
    %s51 = sphi 0, %s49
    %s52 = sphi 0, %s51
    %s66 = sphi 0, %s52
    %s70 = sphi 0, %s70
    %s72 = sphi 0, %s70
    %s73 = sphi 0, %s72
    %s87 = sphi 0, %s73
    %s91 = sphi 0, %s91
    %s93 = sphi 0, %s91
    %s94 = sphi 0, %s93
    %s108 = sphi 0, %s94
    %s112 = sphi 0, %s112
    %s114 = sphi 0, %s112
    %s115 = sphi 0, %s114
    %s129 = sphi 0, %s115
    %s133 = sphi 0, %s133
    %s135 = sphi 0, %s133
    %s136 = sphi 0, %s135
    %s150 = sphi 0, %s136
    %s154 = sphi 0, %s154
    %s156 = sphi 0, %s154
    %s157 = sphi 0, %s156
    %s171 = sphi 0, %s157
    %s175 = sphi 0, %s175
    %s177 = sphi 0, %s175
    %s178 = sphi 0, %s177
    %s192 = sphi 0, %s178
    %s196 = sphi 0, %s196
    %s198 = sphi 0, %s196
    %s199 = sphi 0, %s198
    %s213 = sphi 0, %s199
    %s219 = sphi 0, %s221
    %s222 = sphi 0, %s219
    %s223 = sphi 0, %s222
    %s239 = sphi 0, %s223
  $region4: #{text_network_forward.1} parent=0 // loop_header_branch
    %18 = sbr.rel (%p16) target = $region8
  $region5: #{text_network_forward.1} parent=0 // loop_body
    %s20 = ssub.s32 %s15, 1
    %s21 = ssub.s32 %s15, 2
    %s22 = sadd.s32 %s15, 1
    %s23 = ssub.s32 %s15, %s22
    %p24 = scmp.eq.s32.totalorder %s23, 0
    %s26 = sadd.s32 %s25, 1
    %s27 = scalar_select %p24, %s25, %s26
    %p30 = pneg %p24
    %p31 = scmp.eq.s32.totalorder %s15, 1
    %p32 = por %p30, %p31
    %p33 = scmp.ne.s32.totalorder %s25, %s28
    %p34 = scmp.eq.s32.totalorder %s15, 0
    %p35 = por %p33, %p34
    %p36 = scmp.ne.s32.totalorder %s25, %s28
    %p37 = scmp.eq.s32.totalorder %s20, 1
    %p38 = por %p36, %p37
    %p39 = scmp.ne.s32.totalorder %s28, %s29
    %p40 = scmp.eq.s32.totalorder %s20, 0
    %p41 = por %p39, %p40
    %p42 = scmp.ne.s32.totalorder %s28, %s29
    %p43 = scmp.eq.s32.totalorder %s21, 1
    %p44 = por %p42, %p43
    %p46 = scmp.ne.s32.totalorder %s29, %s45
    %p47 = scmp.eq.s32.totalorder %s21, 0
    %p48 = por %p46, %p47
    %s50 = sadd.s32 %s49, 1
    %p53 = scmp.eq.s32.totalorder %s15, 1
    %p54 = scmp.ne.s32.totalorder %s49, %s51
    %p55 = scmp.eq.s32.totalorder %s15, 0
    %p56 = por %p54, %p55
    %p57 = scmp.ne.s32.totalorder %s49, %s51
    %p58 = scmp.eq.s32.totalorder %s20, 1
    %p59 = por %p57, %p58
    %p60 = scmp.ne.s32.totalorder %s51, %s52
    %p61 = scmp.eq.s32.totalorder %s20, 0
    %p62 = por %p60, %p61
    %p63 = scmp.ne.s32.totalorder %s51, %s52
    %p64 = scmp.eq.s32.totalorder %s21, 1
    %p65 = por %p63, %p64
    %p67 = scmp.ne.s32.totalorder %s52, %s66
    %p68 = scmp.eq.s32.totalorder %s21, 0
    %p69 = por %p67, %p68
    %s71 = sadd.s32 %s70, 1
    %p74 = scmp.eq.s32.totalorder %s15, 1
    %p75 = scmp.ne.s32.totalorder %s70, %s72
    %p76 = scmp.eq.s32.totalorder %s15, 0
    %p77 = por %p75, %p76
    %p78 = scmp.ne.s32.totalorder %s70, %s72
    %p79 = scmp.eq.s32.totalorder %s20, 1
    %p80 = por %p78, %p79
    %p81 = scmp.ne.s32.totalorder %s72, %s73
    %p82 = scmp.eq.s32.totalorder %s20, 0
    %p83 = por %p81, %p82
    %p84 = scmp.ne.s32.totalorder %s72, %s73
    %p85 = scmp.eq.s32.totalorder %s21, 1
    %p86 = por %p84, %p85
    %p88 = scmp.ne.s32.totalorder %s73, %s87
    %p89 = scmp.eq.s32.totalorder %s21, 0
    %p90 = por %p88, %p89
    %s92 = sadd.s32 %s91, 1
    %p95 = scmp.eq.s32.totalorder %s15, 1
    %p96 = scmp.ne.s32.totalorder %s91, %s93
    %p97 = scmp.eq.s32.totalorder %s15, 0
    %p98 = por %p96, %p97
    %p99 = scmp.ne.s32.totalorder %s91, %s93
    %p100 = scmp.eq.s32.totalorder %s20, 1
    %p101 = por %p99, %p100
    %p102 = scmp.ne.s32.totalorder %s93, %s94
    %p103 = scmp.eq.s32.totalorder %s20, 0
    %p104 = por %p102, %p103
    %p105 = scmp.ne.s32.totalorder %s93, %s94
    %p106 = scmp.eq.s32.totalorder %s21, 1
    %p107 = por %p105, %p106
    %p109 = scmp.ne.s32.totalorder %s94, %s108
    %p110 = scmp.eq.s32.totalorder %s21, 0
    %p111 = por %p109, %p110
    %s113 = sadd.s32 %s112, 1
    %p116 = scmp.eq.s32.totalorder %s15, 1
    %p117 = scmp.ne.s32.totalorder %s112, %s114
    %p118 = scmp.eq.s32.totalorder %s15, 0
    %p119 = por %p117, %p118
    %p120 = scmp.ne.s32.totalorder %s112, %s114
    %p121 = scmp.eq.s32.totalorder %s20, 1
    %p122 = por %p120, %p121
    %p123 = scmp.ne.s32.totalorder %s114, %s115
    %p124 = scmp.eq.s32.totalorder %s20, 0
    %p125 = por %p123, %p124
    %p126 = scmp.ne.s32.totalorder %s114, %s115
    %p127 = scmp.eq.s32.totalorder %s21, 1
    %p128 = por %p126, %p127
    %p130 = scmp.ne.s32.totalorder %s115, %s129
    %p131 = scmp.eq.s32.totalorder %s21, 0
    %p132 = por %p130, %p131
    %s134 = sadd.s32 %s133, 1
    %p137 = scmp.eq.s32.totalorder %s15, 1
    %p138 = scmp.ne.s32.totalorder %s133, %s135
    %p139 = scmp.eq.s32.totalorder %s15, 0
    %p140 = por %p138, %p139
    %p141 = scmp.ne.s32.totalorder %s133, %s135
    %p142 = scmp.eq.s32.totalorder %s20, 1
    %p143 = por %p141, %p142
    %p144 = scmp.ne.s32.totalorder %s135, %s136
    %p145 = scmp.eq.s32.totalorder %s20, 0
    %p146 = por %p144, %p145
    %p147 = scmp.ne.s32.totalorder %s135, %s136
    %p148 = scmp.eq.s32.totalorder %s21, 1
    %p149 = por %p147, %p148
    %p151 = scmp.ne.s32.totalorder %s136, %s150
    %p152 = scmp.eq.s32.totalorder %s21, 0
    %p153 = por %p151, %p152
    %s155 = sadd.s32 %s154, 1
    %p158 = scmp.eq.s32.totalorder %s15, 1
    %p159 = scmp.ne.s32.totalorder %s154, %s156
    %p160 = scmp.eq.s32.totalorder %s15, 0
    %p161 = por %p159, %p160
    %p162 = scmp.ne.s32.totalorder %s154, %s156
    %p163 = scmp.eq.s32.totalorder %s20, 1
    %p164 = por %p162, %p163
    %p165 = scmp.ne.s32.totalorder %s156, %s157
    %p166 = scmp.eq.s32.totalorder %s20, 0
    %p167 = por %p165, %p166
    %p168 = scmp.ne.s32.totalorder %s156, %s157
    %p169 = scmp.eq.s32.totalorder %s21, 1
    %p170 = por %p168, %p169
    %p172 = scmp.ne.s32.totalorder %s157, %s171
    %p173 = scmp.eq.s32.totalorder %s21, 0
    %p174 = por %p172, %p173
    %s176 = sadd.s32 %s175, 1
    %p179 = scmp.eq.s32.totalorder %s15, 1
    %p180 = scmp.ne.s32.totalorder %s175, %s177
    %p181 = scmp.eq.s32.totalorder %s15, 0
    %p182 = por %p180, %p181
    %p183 = scmp.ne.s32.totalorder %s175, %s177
    %p184 = scmp.eq.s32.totalorder %s20, 1
    %p185 = por %p183, %p184
    %p186 = scmp.ne.s32.totalorder %s177, %s178
    %p187 = scmp.eq.s32.totalorder %s20, 0
    %p188 = por %p186, %p187
    %p189 = scmp.ne.s32.totalorder %s177, %s178
    %p190 = scmp.eq.s32.totalorder %s21, 1
    %p191 = por %p189, %p190
    %p193 = scmp.ne.s32.totalorder %s178, %s192
    %p194 = scmp.eq.s32.totalorder %s21, 0
    %p195 = por %p193, %p194
    %s197 = sadd.s32 %s196, 1
    %p200 = scmp.eq.s32.totalorder %s15, 1
    %p201 = scmp.ne.s32.totalorder %s196, %s198
    %p202 = scmp.eq.s32.totalorder %s15, 0
    %p203 = por %p201, %p202
    %p204 = scmp.ne.s32.totalorder %s196, %s198
    %p205 = scmp.eq.s32.totalorder %s20, 1
    %p206 = por %p204, %p205
    %p207 = scmp.ne.s32.totalorder %s198, %s199
    %p208 = scmp.eq.s32.totalorder %s20, 0
    %p209 = por %p207, %p208
    %p210 = scmp.ne.s32.totalorder %s198, %s199
    %p211 = scmp.eq.s32.totalorder %s21, 1
    %p212 = por %p210, %p211
    %p214 = scmp.ne.s32.totalorder %s199, %s213
    %p215 = scmp.eq.s32.totalorder %s21, 0
    %p216 = por %p214, %p215
    %s217 = ssub.s32 %s15, %s22
    %p218 = scmp.eq.s32.totalorder %s217, 0
    %s220 = sadd.s32 %s219, 1
    %s221 = scalar_select %p218, %s219, %s220
    %p224 = pneg %p218
    %p225 = scmp.eq.s32.totalorder %s15, 1
    %p226 = por %p224, %p225
    %p227 = scmp.ne.s32.totalorder %s219, %s222
    %p228 = scmp.eq.s32.totalorder %s15, 0
    %p229 = por %p227, %p228
    %p230 = scmp.ne.s32.totalorder %s219, %s222
    %p231 = scmp.eq.s32.totalorder %s20, 1
    %p232 = por %p230, %p231
    %p233 = scmp.ne.s32.totalorder %s222, %s223
    %p234 = scmp.eq.s32.totalorder %s20, 0
    %p235 = por %p233, %p234
    %p236 = scmp.ne.s32.totalorder %s222, %s223
    %p237 = scmp.eq.s32.totalorder %s21, 1
    %p238 = por %p236, %p237
    %p240 = scmp.ne.s32.totalorder %s223, %s239
    %p241 = scmp.eq.s32.totalorder %s21, 0
    %p242 = por %p240, %p241
    %p243 = scmp.le.s32.totalorder 1, %s15
    %p244 = scmp.lt.s32.totalorder %s15, 3
    %p245 = pnand %p243, %p244
    %p246 = pneg %p245
    // Predicated region
    $region9: #{text_network_forward.1} parent=5 // pred_check
      _
    $region10: #{text_network_forward.1} parent=5 // pred_check_branch
      %248 = sbr.rel (%p245) target = $region12
    $region11: #{text_network_forward.1} parent=5 // pred_region
      %s249 = ssub.s32 %s15, 1
      // Predicated region
      $region13: #{text_network_forward.1} parent=11 // pred_check
        %p250 = pneg %p62
      $region14: #{text_network_forward.1} parent=11 // pred_check_branch
        %252 = sbr.rel (%p250) target = $region16
      $region15: #{text_network_forward.1} parent=11 // pred_region
        _
      $region16: #{text_network_forward.1} parent=11 // pred_fallthru
        _
      // Predicated region
      $region17: #{text_network_forward.1} parent=11 // pred_check
        %p253 = pneg %p83
      $region18: #{text_network_forward.1} parent=11 // pred_check_branch
        %255 = sbr.rel (%p253) target = $region20
      $region19: #{text_network_forward.1} parent=11 // pred_region
        _
      $region20: #{text_network_forward.1} parent=11 // pred_fallthru
        _
      // Predicated region
      $region21: #{text_network_forward.1} parent=11 // pred_check
        %p256 = pneg %p104
      $region22: #{text_network_forward.1} parent=11 // pred_check_branch
        %258 = sbr.rel (%p256) target = $region24
      $region23: #{text_network_forward.1} parent=11 // pred_region
        _
      $region24: #{text_network_forward.1} parent=11 // pred_fallthru
        _
      // Predicated region
      $region25: #{text_network_forward.1} parent=11 // pred_check
        %p259 = pneg %p125
      $region26: #{text_network_forward.1} parent=11 // pred_check_branch
        %261 = sbr.rel (%p259) target = $region28
      $region27: #{text_network_forward.1} parent=11 // pred_region
        _
      $region28: #{text_network_forward.1} parent=11 // pred_fallthru
        _
      // Predicated region
      $region29: #{text_network_forward.1} parent=11 // pred_check
        %p262 = pneg %p146
      $region30: #{text_network_forward.1} parent=11 // pred_check_branch
        %264 = sbr.rel (%p262) target = $region32
      $region31: #{text_network_forward.1} parent=11 // pred_region
        _
      $region32: #{text_network_forward.1} parent=11 // pred_fallthru
        _
      // Predicated region
      $region33: #{text_network_forward.1} parent=11 // pred_check
        %p265 = pneg %p167
      $region34: #{text_network_forward.1} parent=11 // pred_check_branch
        %267 = sbr.rel (%p265) target = $region36
      $region35: #{text_network_forward.1} parent=11 // pred_region
        _
      $region36: #{text_network_forward.1} parent=11 // pred_fallthru
        _
      // Predicated region
      $region37: #{text_network_forward.1} parent=11 // pred_check
        %p268 = pneg %p188
      $region38: #{text_network_forward.1} parent=11 // pred_check_branch
        %270 = sbr.rel (%p268) target = $region40
      $region39: #{text_network_forward.1} parent=11 // pred_region
        _
      $region40: #{text_network_forward.1} parent=11 // pred_fallthru
        _
      // Predicated region
      $region41: #{text_network_forward.1} parent=11 // pred_check
        %p271 = pneg %p209
      $region42: #{text_network_forward.1} parent=11 // pred_check_branch
        %273 = sbr.rel (%p271) target = $region44
      $region43: #{text_network_forward.1} parent=11 // pred_region
        _
      $region44: #{text_network_forward.1} parent=11 // pred_fallthru
        _
    $region12: #{text_network_forward.1} parent=5 // pred_fallthru
      _
    %p274 = scmp.lt.s32.totalorder %s15, 2
    // Predicated region
    $region45: #{text_network_forward.1} parent=5 // pred_check
      %p275 = pneg %p274
    $region46: #{text_network_forward.1} parent=5 // pred_check_branch
      %277 = sbr.rel (%p275) target = $region48
    $region47: #{text_network_forward.1} parent=5 // pred_region
      // Predicated region
      $region49: #{text_network_forward.1} parent=47 // pred_check
        %p278 = pneg %p35
      $region50: #{text_network_forward.1} parent=47 // pred_check_branch
        %280 = sbr.rel (%p278) target = $region52
      $region51: #{text_network_forward.1} parent=47 // pred_region
        %p281 = scmp.lt.s32.totalorder %s15, 1
        %s282 = scalar_select %p281, %s15, 1
        %s283 = smul.addr %s282, 8
        %s284 = scalar_lea.vmem %s0, %s283
      $region52: #{text_network_forward.1} parent=47 // pred_fallthru
        _
    $region48: #{text_network_forward.1} parent=5 // pred_fallthru
      _
    %p285 = scmp.le.s32.totalorder 1, %s15
    %p286 = scmp.lt.s32.totalorder %s15, 3
    %p287 = pnand %p285, %p286
    %p288 = pneg %p287
    // Predicated region
    $region53: #{text_network_forward.1} parent=5 // pred_check
      _
    $region54: #{text_network_forward.1} parent=5 // pred_check_branch
      %290 = sbr.rel (%p287) target = $region56
    $region55: #{text_network_forward.1} parent=5 // pred_region
      %s291 = ssub.s32 %s15, 1
      %p292 = scmp.lt.s32.totalorder %s20, 1
      %s293 = scalar_select %p292, %s20, 1
      %s294 = smul.addr %s293, 8
      %s295 = scalar_lea.vmem %s0, %s294
      %p296 = pneg %p41
      %p297 = pneg %p38
      %p298 = pneg %p62
      %p299 = pneg %p59
      %p300 = pneg %p83
      %p301 = pneg %p80
      %p302 = pneg %p104
      %p303 = pneg %p101
      %p304 = pneg %p125
      %p305 = pneg %p122
      %p306 = pneg %p146
      %p307 = pneg %p143
      %p308 = pneg %p167
      %p309 = pneg %p164
      %p310 = pneg %p188
      %p311 = pneg %p185
      %p312 = pneg %p209
      %p313 = pneg %p206
      %p314 = pneg %p235
      %p315 = pneg %p232
      %p316 = scmp.lt.s32.totalorder %s20, 1
      %s317 = scalar_select %p316, %s20, 1
      %s318 = smul.addr %s317, 8
      %s319 = scalar_lea.vmem %s9, %s318
      %p320 = scmp.lt.s32.totalorder %s20, 1
      %s321 = scalar_select %p320, %s20, 1
      %s322 = smul.addr %s321, 8
      %s323 = scalar_lea.vmem %s0, %s322
      %p324 = scmp.lt.s32.totalorder %s20, 1
      %s325 = scalar_select %p324, %s20, 1
      %s326 = smul.addr %s325, 8
      %s327 = scalar_lea.vmem %s9, %s326
      %v328 = vld [vmem:[%s323] sm:$0xff]
      %v329 = vld [vmem:[%s1] sm:$0x1]
      %v330 = vld [vmem:[%s2] sm:$0x1]
      %v331 = vlaneseq
      %v332 = vand.u32 %v331, 127
      %vm333 = vcmp.lt.s32.totalorder %v332, 32
      %v334 = vsel %vm333, 1, 0
      %v335 = vcvt.s32.f32 %v334
      %v336 = vmul.f32 %v328, %v335
      %337 = vadd.xlane.f32.xlu0 %v336
      %v338 = vpop.xlane.xlu0 %337
      %v339 = vmul.f32 %v338, 0.03125
      %v340 = vsub.f32 %v336, %v339
      %v341 = vmul.f32 %v340, %v335
      %v342 = vmul.f32 %v341, %v341
      %343 = vadd.xlane.f32.xlu0 %v342
      %v344 = vpop.xlane.xlu0 %343
      %v345 = vmul.f32 %v344, 0.03125
      %v346 = vadd.f32 %v345, 1e-05
      %v347 = vrsqrt.pop %v346
      %v348 = vmul.f32 %v341, %v347
      %v350 = vlaneseq
      %v351 = vshrl.u32 %v350, 7
      %v352 = vsub.s32 0, %v351
      %v353 = vrot.slane %v329, %v352
      %v355 = vmul.f32 %v348, %v353
      %v357 = vlaneseq
      %v358 = vshrl.u32 %v357, 7
      %v359 = vsub.s32 0, %v358
      %v360 = vrot.slane %v330, %v359
      %v362 = vadd.f32 %v355, %v360
      %v363 = vld [vmem:[%s3] sm:$0xff]
      %v364 = vld [vmem:[%s3 + $0x8] sm:$0xff]
      %v365 = vld [vmem:[%s3 + $0x10] sm:$0xff]
      %v366 = vld [vmem:[%s3 + $0x18] sm:$0xff]
      %v367 = vld [vmem:[%s3 + $0x20] sm:$0xff]
      %v368 = vld [vmem:[%s3 + $0x28] sm:$0xff]
      %v369 = vld [vmem:[%s3 + $0x30] sm:$0xff]
      %v370 = vld [vmem:[%s3 + $0x38] sm:$0xff]
      %v371 = vld [vmem:[%s3 + $0x40] sm:$0xff]
      %v372 = vld [vmem:[%s3 + $0x48] sm:$0xff]
      %v373 = vld [vmem:[%s3 + $0x50] sm:$0xff]
      %v374 = vld [vmem:[%s3 + $0x58] sm:$0xff]
      %v375 = vld [vmem:[%s3 + $0x60] sm:$0xff]
      %v376 = vld [vmem:[%s3 + $0x68] sm:$0xff]
      %v377 = vld [vmem:[%s3 + $0x70] sm:$0xff]
      %v378 = vld [vmem:[%s3 + $0x78] sm:$0xff]
      %v379 = vld [vmem:[%s4] sm:$0x1]
      %v381 = vlaneseq
      %v382 = vshrl.u32 %v381, 7
      %v383 = vsub.s32 0, %v382
      %v384 = vrot.slane %v379, %v383
      %386 = vmatprep.subr.mxu0 0.0
      %387 = vmatpush1.msra.mxu0 %v363
      %388 = vmatprep.subr.mxu0 0.0
      %389 = vmatpush1.msra.mxu0 %v364
      %390 = vmatprep.subr.mxu0 0.0
      %391 = vmatpush1.msra.mxu0 %v365
      %392 = vmatprep.subr.mxu0 0.0
      %393 = vmatpush1.msra.mxu0 %v366
      %394 = vmatprep.subr.mxu0 0.0
      %395 = vmatpush1.msra.mxu0 %v367
      %396 = vmatprep.subr.mxu0 0.0
      %397 = vmatpush1.msra.mxu0 %v368
      %398 = vmatprep.subr.mxu0 0.0
      %399 = vmatpush1.msra.mxu0 %v369
      %400 = vmatprep.subr.mxu0 0.0
      %401 = vmatpush1.msra.mxu0 %v370
      %402 = vmatprep.subr.mxu0 0.0
      %403 = vmatpush1.msra.mxu0 %v371
      %404 = vmatprep.subr.mxu0 0.0
      %405 = vmatpush1.msra.mxu0 %v372
      %406 = vmatprep.subr.mxu0 0.0
      %407 = vmatpush1.msra.mxu0 %v373
      %408 = vmatprep.subr.mxu0 0.0
      %409 = vmatpush1.msra.mxu0 %v374
      %410 = vmatprep.subr.mxu0 0.0
      %411 = vmatpush1.msra.mxu0 %v375
      %412 = vmatprep.subr.mxu0 0.0
      %413 = vmatpush1.msra.mxu0 %v376
      %414 = vmatprep.subr.mxu0 0.0
      %415 = vmatpush1.msra.mxu0 %v377
      %416 = vmatprep.subr.mxu0 0.0
      %417 = vmatpush1.msra.mxu0 %v378
      %418 = vmatprep.subr.mxu0 0.0
      %419 = vmatpush1.msra.mxu0 0.0
      %420 = vmatprep.subr.mxu0 0.0
      %421 = vmatpush1.msra.mxu0 0.0
      %422 = vmatprep.subr.mxu0 0.0
      %423 = vmatpush1.msra.mxu0 0.0
      %424 = vmatprep.subr.mxu0 0.0
      %425 = vmatpush1.msra.mxu0 0.0
      %426 = vmatprep.subr.mxu0 0.0
      %427 = vmatpush1.msra.mxu0 0.0
      %428 = vmatprep.subr.mxu0 0.0
      %429 = vmatpush1.msra.mxu0 0.0
      %430 = vmatprep.subr.mxu0 0.0
      %431 = vmatpush1.msra.mxu0 0.0
      %432 = vmatprep.subr.mxu0 0.0
      %433 = vmatpush1.msra.mxu0 0.0
      %434 = vmatprep.subr.mxu0 0.0
      %435 = vmatpush1.msra.mxu0 0.0
      %436 = vmatprep.subr.mxu0 0.0
      %437 = vmatpush1.msra.mxu0 0.0
      %438 = vmatprep.subr.mxu0 0.0
      %439 = vmatpush1.msra.mxu0 0.0
      %440 = vmatprep.subr.mxu0 0.0
      %441 = vmatpush1.msra.mxu0 0.0
      %442 = vmatprep.subr.mxu0 0.0
      %443 = vmatpush1.msra.mxu0 0.0
      %444 = vmatprep.subr.mxu0 0.0
      %445 = vmatpush1.msra.mxu0 0.0
      %446 = vmatprep.subr.mxu0 0.0
      %447 = vmatpush1.msra.mxu0 0.0
      %448 = vmatprep.subr.mxu0 0.0
      %449 = vmatpush1.msra.mxu0 0.0
      %450 = vmatprep.mubr.f32.mxu0 0.0
      %451 = vmatmul.mubr.f32.gmra.mrb[0].mxu0 %v362
      %v452 = vpop.f32.mrb[0].mxu0
      %v453 = vadd.f32 %v384, %v452
      %v454 = vpop.f32.mrb[0].mxu0
      %455 = vdwg.mxu0
      %v456 = vmul.f32 %v453, 0.5
      %v457 = vmul.f32 %v453, 0.70710677
      %v458 = verf.f32.pop %v457
      %v459 = vadd.f32 %v458, 1.0
      %v460 = vmul.f32 %v456, %v459
      %v461 = vld [vmem:[%s5] sm:$0xff]
      %v462 = vld [vmem:[%s5 + $0x8] sm:$0xff]
      %v463 = vld [vmem:[%s5 + $0x10] sm:$0xff]
      %v464 = vld [vmem:[%s5 + $0x18] sm:$0xff]
      %v465 = vld [vmem:[%s5 + $0x20] sm:$0xff]
      %v466 = vld [vmem:[%s5 + $0x28] sm:$0xff]
      %v467 = vld [vmem:[%s5 + $0x30] sm:$0xff]
      %v468 = vld [vmem:[%s5 + $0x38] sm:$0xff]
      %v469 = vld [vmem:[%s5 + $0x40] sm:$0xff]
      %v470 = vld [vmem:[%s5 + $0x48] sm:$0xff]
      %v471 = vld [vmem:[%s5 + $0x50] sm:$0xff]
      %v472 = vld [vmem:[%s5 + $0x58] sm:$0xff]
      %v473 = vld [vmem:[%s5 + $0x60] sm:$0xff]
      %v474 = vld [vmem:[%s5 + $0x68] sm:$0xff]
      %v475 = vld [vmem:[%s5 + $0x70] sm:$0xff]
      %v476 = vld [vmem:[%s5 + $0x78] sm:$0xff]
      %v477 = vld [vmem:[%s6] sm:$0x1]
      %v479 = vlaneseq
      %v480 = vshrl.u32 %v479, 7
      %v481 = vsub.s32 0, %v480
      %v482 = vrot.slane %v477, %v481
      %484 = vmatprep.subr.mxu0 0.0
      %485 = vmatpush1.msra.mxu0 %v461
      %486 = vmatprep.subr.mxu0 0.0
      %487 = vmatpush1.msra.mxu0 %v462
      %488 = vmatprep.subr.mxu0 0.0
      %489 = vmatpush1.msra.mxu0 %v463
      %490 = vmatprep.subr.mxu0 0.0
      %491 = vmatpush1.msra.mxu0 %v464
      %492 = vmatprep.subr.mxu0 0.0
      %493 = vmatpush1.msra.mxu0 %v465
      %494 = vmatprep.subr.mxu0 0.0
      %495 = vmatpush1.msra.mxu0 %v466
      %496 = vmatprep.subr.mxu0 0.0
      %497 = vmatpush1.msra.mxu0 %v467
      %498 = vmatprep.subr.mxu0 0.0
      %499 = vmatpush1.msra.mxu0 %v468
      %500 = vmatprep.subr.mxu0 0.0
      %501 = vmatpush1.msra.mxu0 %v469
      %502 = vmatprep.subr.mxu0 0.0
      %503 = vmatpush1.msra.mxu0 %v470
      %504 = vmatprep.subr.mxu0 0.0
      %505 = vmatpush1.msra.mxu0 %v471
      %506 = vmatprep.subr.mxu0 0.0
      %507 = vmatpush1.msra.mxu0 %v472
      %508 = vmatprep.subr.mxu0 0.0
      %509 = vmatpush1.msra.mxu0 %v473
      %510 = vmatprep.subr.mxu0 0.0
      %511 = vmatpush1.msra.mxu0 %v474
      %512 = vmatprep.subr.mxu0 0.0
      %513 = vmatpush1.msra.mxu0 %v475
      %514 = vmatprep.subr.mxu0 0.0
      %515 = vmatpush1.msra.mxu0 %v476
      %516 = vmatprep.subr.mxu0 0.0
      %517 = vmatpush1.msra.mxu0 0.0
      %518 = vmatprep.subr.mxu0 0.0
      %519 = vmatpush1.msra.mxu0 0.0
      %520 = vmatprep.subr.mxu0 0.0
      %521 = vmatpush1.msra.mxu0 0.0
      %522 = vmatprep.subr.mxu0 0.0
      %523 = vmatpush1.msra.mxu0 0.0
      %524 = vmatprep.subr.mxu0 0.0
      %525 = vmatpush1.msra.mxu0 0.0
      %526 = vmatprep.subr.mxu0 0.0
      %527 = vmatpush1.msra.mxu0 0.0
      %528 = vmatprep.subr.mxu0 0.0
      %529 = vmatpush1.msra.mxu0 0.0
      %530 = vmatprep.subr.mxu0 0.0
      %531 = vmatpush1.msra.mxu0 0.0
      %532 = vmatprep.subr.mxu0 0.0
      %533 = vmatpush1.msra.mxu0 0.0
      %534 = vmatprep.subr.mxu0 0.0
      %535 = vmatpush1.msra.mxu0 0.0
      %536 = vmatprep.subr.mxu0 0.0
      %537 = vmatpush1.msra.mxu0 0.0
      %538 = vmatprep.subr.mxu0 0.0
      %539 = vmatpush1.msra.mxu0 0.0
      %540 = vmatprep.subr.mxu0 0.0
      %541 = vmatpush1.msra.mxu0 0.0
      %542 = vmatprep.subr.mxu0 0.0
      %543 = vmatpush1.msra.mxu0 0.0
      %544 = vmatprep.subr.mxu0 0.0
      %545 = vmatpush1.msra.mxu0 0.0
      %546 = vmatprep.subr.mxu0 0.0
      %547 = vmatpush1.msra.mxu0 0.0
      %548 = vmatprep.mubr.f32.mxu0 0.0
      %549 = vmatmul.mubr.f32.gmra.mrb[0].mxu0 %v460
      %v550 = vpop.f32.mrb[0].mxu0
      %v551 = vadd.f32 %v482, %v550
      %v552 = vpop.f32.mrb[0].mxu0
      %553 = vdwg.mxu0
      %v554 = vld [vmem:[%s7] sm:$0x1]
      %v555 = vld [vmem:[%s8] sm:$0x1]
      %v556 = vmul.f32 %v551, %v335
      %557 = vadd.xlane.f32.xlu0 %v556
      %v558 = vpop.xlane.xlu0 %557
      %v559 = vmul.f32 %v558, 0.03125
      %v560 = vsub.f32 %v556, %v559
      %v561 = vmul.f32 %v560, %v335
      %v562 = vmul.f32 %v561, %v561
      %563 = vadd.xlane.f32.xlu0 %v562
      %v564 = vpop.xlane.xlu0 %563
      %v565 = vmul.f32 %v564, 0.03125
      %v566 = vadd.f32 %v565, 1e-05
      %v567 = vrsqrt.pop %v566
      %v568 = vmul.f32 %v561, %v567
      %v570 = vlaneseq
      %v571 = vshrl.u32 %v570, 7
      %v572 = vsub.s32 0, %v571
      %v573 = vrot.slane %v554, %v572
      %v575 = vmul.f32 %v568, %v573
      %v577 = vlaneseq
      %v578 = vshrl.u32 %v577, 7
      %v579 = vsub.s32 0, %v578
      %v580 = vrot.slane %v555, %v579
      %v582 = vadd.f32 %v575, %v580
      %583 = vst [vmem:[%s327] sm:$0xff] %v582
      %p584 = scmp.lt.s32.totalorder %s20, 1
      %s585 = scalar_select %p584, %s20, 1
      %s586 = smul.addr %s585, 8
      %s587 = scalar_lea.vmem %s9, %s586
      // Predicated region
      $region57: #{text_network_forward.1} parent=55 // pred_check
        %p588 = pneg %p232
      $region58: #{text_network_forward.1} parent=55 // pred_check_branch
        %590 = sbr.rel (%p588) target = $region60
      $region59: #{text_network_forward.1} parent=55 // pred_region
        _
      $region60: #{text_network_forward.1} parent=55 // pred_fallthru
        _
    $region56: #{text_network_forward.1} parent=5 // pred_fallthru
      _
    %p591 = scmp.le.s32.totalorder 2, %s15
    // Predicated region
    $region61: #{text_network_forward.1} parent=5 // pred_check
      %p592 = pneg %p591
    $region62: #{text_network_forward.1} parent=5 // pred_check_branch
      %594 = sbr.rel (%p592) target = $region64
    $region63: #{text_network_forward.1} parent=5 // pred_region
      %s595 = ssub.s32 %s15, 2
      // Predicated region
      $region65: #{text_network_forward.1} parent=63 // pred_check
        %p596 = pneg %p238
      $region66: #{text_network_forward.1} parent=63 // pred_check_branch
        %598 = sbr.rel (%p596) target = $region68
      $region67: #{text_network_forward.1} parent=63 // pred_region
        %p599 = scmp.lt.s32.totalorder %s21, 1
        %s600 = scalar_select %p599, %s21, 1
        %s601 = smul.addr %s600, 8
        %s602 = scalar_lea.vmem %s9, %s601
      $region68: #{text_network_forward.1} parent=63 // pred_fallthru
        _
    $region64: #{text_network_forward.1} parent=5 // pred_fallthru
      _
  $region6: #{text_network_forward.1} parent=0 // loop_footer
    %s19 = sadd.s32 1, %s15
  $region7: #{text_network_forward.1} parent=0 // loop_footer_branch
    %14 = sbr.rel target = $region3
  $region8: #{text_network_forward.1} parent=0 // loop_exit
    _

</llo_original>
